<compile_context>
chip_gen: v6e
topology: v6e:2x2x1
jax: 0.10.0
libtpu: 0.0.40
codegen_flags: <defaults>
</compile_context>

<pallas_src>
import math
import functools

import jax
import jax.numpy as jnp
from jax.experimental import pallas as pl
from jax.experimental.pallas import tpu as pltpu


# ---------------------------------------------------------------------------
# Kernels
# ---------------------------------------------------------------------------
def _linear_kernel(x_ref, w_ref, b_ref, o_ref, acc_ref):
    # y = x @ W + b; K axis (grid axis 2) accumulated in a VMEM f32 scratch.
    k = pl.program_id(2)

    @pl.when(k == 0)
    def _init():
        acc_ref[...] = jnp.zeros_like(acc_ref)

    # bf16 operands, f32 accumulation on the MXU.
    acc_ref[...] += jnp.dot(
        x_ref[...], w_ref[...], preferred_element_type=jnp.float32
    )

    @pl.when(k == pl.num_programs(2) - 1)
    def _finalize():
        o_ref[...] = (acc_ref[...] + b_ref[...]).astype(o_ref.dtype)


def _flash_attn_outproj_kernel(
    q_ref, k_ref, v_ref, wo_ref, bo_ref, o_ref,
    m_sc, l_sc, acc_sc, *,
    n_heads, d_head, q_base, k_base, v_base, kv_tile, seq_len, padded_len,
):
    # grid = (batch, q_tiles, kv_tiles); kv axis is the streamed reduction.
    # q_ref: (Tq, Cq), k_ref/v_ref: (Tk, Ckv) bf16; o_ref: (Tq, E) f32.
    j = pl.program_id(2)

    @pl.when(j == 0)
    def _init():
        m_sc[...] = jnp.full_like(m_sc, -jnp.inf)
        l_sc[...] = jnp.zeros_like(l_sc)
        acc_sc[...] = jnp.zeros_like(acc_sc)

    # Mask padded KV positions (only emitted when the sequence was padded).
    if padded_len != seq_len:
        kv_pos = j * kv_tile + jax.lax.broadcasted_iota(jnp.int32, (1, kv_tile), 1)
        kv_valid = kv_pos < seq_len                     # (1, Tk)
    else:
        kv_valid = None

    for h in range(n_heads):  # static unrolled loop over heads
        ql = q_base + h * d_head
        kl = k_base + h * d_head
        vl = v_base + h * d_head
        q = q_ref[:, ql:ql + d_head]                    # (Tq, Dh) bf16, pre-scaled
        k = k_ref[:, kl:kl + d_head]                    # (Tk, Dh) bf16
        v = v_ref[:, vl:vl + d_head]                    # (Tk, Dh) bf16

        # QK^T in stored layout (no transpose), f32 accumulation.
        s = jax.lax.dot_general(
            q, k, (((1,), (1,)), ((), ())), preferred_element_type=jnp.float32
        )                                               # (Tq, Tk)
        if kv_valid is not None:
            s = jnp.where(kv_valid, s, -jnp.inf)

        m_prev = m_sc[h]
        m_new = jnp.maximum(m_prev, jnp.max(s, axis=-1, keepdims=True))
        alpha = jnp.exp(m_prev - m_new)
        p = jnp.exp(s - m_new)
        l_sc[h] = alpha * l_sc[h] + jnp.sum(p, axis=-1, keepdims=True)
        acc_sc[h] = alpha * acc_sc[h] + jnp.dot(
            p.astype(v.dtype), v, preferred_element_type=jnp.float32
        )
        m_sc[h] = m_new

    @pl.when(j == pl.num_programs(2) - 1)
    def _finalize():
        outs = []
        for h in range(n_heads):
            inv_l = pl.reciprocal(l_sc[h], approx=False)   # exact; once per tile
            outs.append(acc_sc[h] * inv_l)
        attn = jnp.concatenate(outs, axis=-1)              # (Tq, E) f32, head-merged
        # Fused out_proj: attention output never leaves VMEM.
        out = jnp.dot(
            attn.astype(wo_ref.dtype), wo_ref[...], preferred_element_type=jnp.float32
        ) + bo_ref[...]
        o_ref[...] = out.astype(o_ref.dtype)


# ---------------------------------------------------------------------------
# Pallas wrappers
# ---------------------------------------------------------------------------
_VMEM_LIMIT = 48 * 1024 * 1024  # safe on v5e/v6e (128 MiB) and v7x (64 MiB/TC)


def _pick_tile(dim, candidates):
    for c in candidates:
        if dim % c == 0:
            return c
    return dim


def _round_up(x, m):
    return (x + m - 1) // m * m


def pallas_qkv_projection(x2d, w, b):
    # x2d: (M, E) bf16, w: (E, 3E) bf16 (Q columns pre-scaled), b: (1, 3E) f32.
    M, K = x2d.shape
    K2, N = w.shape
    assert K == K2
    tm = _pick_tile(M, (512, 256, 128))
    tn = _pick_tile(N, (512, 256, 128))
    tk = _pick_tile(K, (1024, 512, 256, 128))
    grid = (M // tm, N // tn, K // tk)

    return pl.pallas_call(
        _linear_kernel,
        out_shape=jax.ShapeDtypeStruct((M, N), jnp.bfloat16),
        grid_spec=pltpu.PrefetchScalarGridSpec(
            num_scalar_prefetch=0,
            grid=grid,
            in_specs=[
                pl.BlockSpec((tm, tk), lambda i, j, k: (i, k)),
                pl.BlockSpec((tk, tn), lambda i, j, k: (k, j)),
                pl.BlockSpec((1, tn), lambda i, j, k: (0, j)),
            ],
            out_specs=pl.BlockSpec((tm, tn), lambda i, j, k: (i, j)),
            scratch_shapes=[pltpu.VMEM((tm, tn), jnp.float32)],
        ),
        compiler_params=pltpu.CompilerParams(
            dimension_semantics=("parallel", "parallel", "arbitrary"),
            vmem_limit_bytes=_VMEM_LIMIT,
        ),
    )(x2d, w, b)


def pallas_flash_attention_outproj(qkv, w_out, b_out, *, n_heads, d_head,
                                   seq_len, q_tile, kv_tile):
    # qkv: (B, S_pad, 3E) bf16; w_out: (E, E) bf16; b_out: (E,) f32.
    B, S_pad, three_e = qkv.shape
    E = three_e // 3
    num_q = S_pad // q_tile
    num_kv = S_pad // kv_tile

    if E % 128 == 0:
        # Lane-aligned E-wide column blocks: each ref only carries the bytes it
        # needs (Q / K / V column group 0 / 1 / 2 of the fused qkv buffer).
        q_spec = pl.BlockSpec((None, q_tile, E), lambda b, i, j: (b, i, 0))
        k_spec = pl.BlockSpec((None, kv_tile, E), lambda b, i, j: (b, j, 1))
        v_spec = pl.BlockSpec((None, kv_tile, E), lambda b, i, j: (b, j, 2))
        q_base = k_base = v_base = 0
    else:
        # Small-E fallback: E-wide lane blocks would violate the (8,128) layout
        # rule, so stream full-3E rows and slice columns in-kernel.
        q_spec = pl.BlockSpec((None, q_tile, three_e), lambda b, i, j: (b, i, 0))
        k_spec = pl.BlockSpec((None, kv_tile, three_e), lambda b, i, j: (b, j, 0))
        v_spec = pl.BlockSpec((None, kv_tile, three_e), lambda b, i, j: (b, j, 0))
        q_base, k_base, v_base = 0, E, 2 * E

    kernel = functools.partial(
        _flash_attn_outproj_kernel,
        n_heads=n_heads, d_head=d_head,
        q_base=q_base, k_base=k_base, v_base=v_base,
        kv_tile=kv_tile, seq_len=seq_len, padded_len=S_pad,
    )

    return pl.pallas_call(
        kernel,
        out_shape=jax.ShapeDtypeStruct((B, S_pad, E), jnp.float32),
        grid_spec=pltpu.PrefetchScalarGridSpec(
            num_scalar_prefetch=0,
            grid=(B, num_q, num_kv),
            in_specs=[
                q_spec, k_spec, v_spec,
                pl.BlockSpec((E, E), lambda b, i, j: (0, 0)),
                pl.BlockSpec((1, E), lambda b, i, j: (0, 0)),
            ],
            out_specs=pl.BlockSpec((None, q_tile, E), lambda b, i, j: (b, i, 0)),
            scratch_shapes=[
                pltpu.VMEM((n_heads, q_tile, 1), jnp.float32),       # running max
                pltpu.VMEM((n_heads, q_tile, 1), jnp.float32),       # running sum
                pltpu.VMEM((n_heads, q_tile, d_head), jnp.float32),  # accumulator
            ],
        ),
        compiler_params=pltpu.CompilerParams(
            dimension_semantics=("parallel", "parallel", "arbitrary"),
            vmem_limit_bytes=_VMEM_LIMIT,
        ),
    )(qkv, qkv, qkv, w_out, b_out.reshape(1, E))


# ---------------------------------------------------------------------------
# Full forward pass
# ---------------------------------------------------------------------------
def self_attention_forward(x, params, n_heads):
    B, S, E = x.shape
    d_head = E // n_heads

    # Sequence tiling (pad to a tile multiple; padded keys are masked in-kernel).
    seq_tile = 256 if S >= 256 else 128
    S_pad = _round_up(S, seq_tile)
    q_tile = kv_tile = seq_tile

    # Fold the 1/sqrt(d_head) softmax scale into the Q columns of the fused
    # projection (weights only, done once); cast MXU operands to bf16.
    scale = 1.0 / math.sqrt(d_head)
    col_scale = jnp.concatenate(
        [jnp.full((E,), scale, jnp.float32), jnp.ones((2 * E,), jnp.float32)]
    )
    w_in = (params["w_in"] * col_scale[None, :]).astype(jnp.bfloat16)
    b_in = (params["b_in"] * col_scale).reshape(1, 3 * E)  # f32, added to f32 acc

    if S_pad != S:
        x = jnp.pad(x, ((0, 0), (0, S_pad - S), (0, 0)))
    x2d = x.reshape(B * S_pad, E).astype(jnp.bfloat16)

    # One fused QKV projection (x streamed once, lane-dense 3E-wide output).
    qkv = pallas_qkv_projection(x2d, w_in, b_in).reshape(B, S_pad, 3 * E)

    # Flash attention with fused out_proj; output already (B, S_pad, E).
    out = pallas_flash_attention_outproj(
        qkv,
        params["w_out"].astype(jnp.bfloat16),
        params["b_out"].astype(jnp.float32),
        n_heads=n_heads, d_head=d_head, seq_len=S,
        q_tile=q_tile, kv_tile=kv_tile,
    )
    return out[:, :S, :]


# ---------------------------------------------------------------------------
# Pure-JAX reference (mirrors the PyTorch module, non-causal path) for checking
# ---------------------------------------------------------------------------
def reference_forward(x, params, n_heads):
    B, S, E = x.shape
    d_head = E // n_heads
    qkv = x @ params["w_in"] + params["b_in"]
    q, k, v = jnp.split(qkv, 3, axis=-1)

    def heads(t):
        return t.reshape(B, S, n_heads, d_head).transpose(0, 2, 1, 3)

    q, k, v = heads(q), heads(k), heads(v)
    w = jnp.einsum("bhsd,bhtd->bhst", q, k) / math.sqrt(d_head)
    w = jax.nn.softmax(w, axis=-1)
    o = jnp.einsum("bhst,bhtd->bhsd", w, v)
    o = o.transpose(0, 2, 1, 3).reshape(B, S, E)
    return o @ params["w_out"] + params["b_out"]


# ---------------------------------------------------------------------------
# Main
# ---------------------------------------------------------------------------
if __name__ == "__main__":
    B, S, E, H = 2, 8, 32, 4  # batch, seq, d_embed, n_heads

    key = jax.random.PRNGKey(0)
    kx, k1, k2, k3, k4 = jax.random.split(key, 5)

    bound_in = 1.0 / math.sqrt(E)
    params = {
        # stored as (in_features, out_features) == W^T of the PyTorch weight
        "w_in": jax.random.uniform(k1, (E, 3 * E), jnp.float32, -bound_in, bound_in),
        "b_in": jax.random.uniform(k2, (3 * E,), jnp.float32, -bound_in, bound_in),
        "w_out": jax.random.uniform(k3, (E, E), jnp.float32, -bound_in, bound_in),
        "b_out": jax.random.uniform(k4, (E,), jnp.float32, -bound_in, bound_in),
    }

    x = jax.random.normal(kx, (B, S, E), jnp.float32)

    out = jax.block_until_ready(self_attention_forward(x, params, H))
    ref = reference_forward(x, params, H)

    assert out.shape == (B, S, E)
    max_err = jnp.max(jnp.abs(out - ref))
    # Tolerance reflects bf16 MXU operands (f32 accumulation) vs. the f32 ref.
    assert jnp.allclose(out, ref, atol=5e-2, rtol=5e-2), f"max abs err = {max_err}"

    print("KERNEL_OK")
</pallas_src>

<mosaic_0001>
module attributes {stable_mosaic.version = 11 : i64} {
  func.func @_linear_kernel(%arg0: i32, %arg1: i32, %arg2: i32, %arg3: memref<256x32xbf16, #tpu.memory_space<vmem>>, %arg4: memref<32x96xbf16, #tpu.memory_space<vmem>>, %arg5: memref<1x96xf32, #tpu.memory_space<vmem>>, %arg6: memref<256x96xbf16, #tpu.memory_space<vmem>>, %arg7: memref<256x96xf32, #tpu.memory_space<vmem>>) attributes {dimension_semantics = [#tpu.dimension_semantics<parallel>, #tpu.dimension_semantics<parallel>, #tpu.dimension_semantics<arbitrary>], iteration_bounds = array<i64: 1, 1, 1>, scalar_prefetch = 0 : i64, scratch_operands = 1 : i64, tpu.core_type = #tpu.core_type<tc>, window_params = [{transform_indices = @transform_0, window_bounds = array<i64: 256, 32>}, {transform_indices = @transform_1, window_bounds = array<i64: 32, 96>}, {transform_indices = @transform_2, window_bounds = array<i64: 1, 96>}, {transform_indices = @transform_3, window_bounds = array<i64: 256, 96>}]} {
    %c0_i32 = arith.constant 0 : i32
    %0 = arith.cmpi eq, %arg2, %c0_i32 : i32
    %1 = arith.extui %0 : i1 to i32
    %c0_i32_0 = arith.constant 0 : i32
    %2 = arith.cmpi ne, %1, %c0_i32_0 : i32
    scf.if %2 {
      %cst_10 = arith.constant 0.000000e+00 : f32
      %12 = vector.broadcast %cst_10 : f32 to vector<256x96xf32>
      %c0_11 = arith.constant 0 : index
      %c0_12 = arith.constant 0 : index
      %13 = vector.load %arg7[%c0_11, %c0_12] : memref<256x96xf32, #tpu.memory_space<vmem>>, vector<256x96xf32>
      tpu.vector_store %arg7[%c0_11, %c0_12], %12 {strides = array<i32>} : memref<256x96xf32, #tpu.memory_space<vmem>>, vector<256x96xf32>,
    } else {
    }
    %c0 = arith.constant 0 : index
    %c0_1 = arith.constant 0 : index
    %3 = vector.load %arg7[%c0, %c0_1] : memref<256x96xf32, #tpu.memory_space<vmem>>, vector<256x96xf32>
    %c0_2 = arith.constant 0 : index
    %c0_3 = arith.constant 0 : index
    %4 = vector.load %arg3[%c0_2, %c0_3] : memref<256x32xbf16, #tpu.memory_space<vmem>>, vector<256x32xbf16>
    %c0_4 = arith.constant 0 : index
    %c0_5 = arith.constant 0 : index
    %5 = vector.load %arg4[%c0_4, %c0_5] : memref<32x96xbf16, #tpu.memory_space<vmem>>, vector<32x96xbf16>
    %cst = arith.constant dense<0.000000e+00> : vector<256x96xf32>
    %6 = tpu.matmul %4, %5, %cst {dimension_numbers = #tpu.dot_dimension_numbers<[1], [0], [0], [1], [0, 0, 1, 1], [], []>} : vector<256x32xbf16>, vector<32x96xbf16>, vector<256x96xf32> -> vector<256x96xf32>
    %7 = arith.addf %3, %6 : vector<256x96xf32>
    %c0_6 = arith.constant 0 : index
    %c0_7 = arith.constant 0 : index
    %8 = vector.load %arg7[%c0_6, %c0_7] : memref<256x96xf32, #tpu.memory_space<vmem>>, vector<256x96xf32>
    tpu.vector_store %arg7[%c0_6, %c0_7], %7 {strides = array<i32>} : memref<256x96xf32, #tpu.memory_space<vmem>>, vector<256x96xf32>,
    %c0_i32_8 = arith.constant 0 : i32
    %9 = arith.cmpi eq, %arg2, %c0_i32_8 : i32
    %10 = arith.extui %9 : i1 to i32
    %c0_i32_9 = arith.constant 0 : i32
    %11 = arith.cmpi ne, %10, %c0_i32_9 : i32
    scf.if %11 {
      %c0_10 = arith.constant 0 : index
      %c0_11 = arith.constant 0 : index
      %12 = vector.load %arg7[%c0_10, %c0_11] : memref<256x96xf32, #tpu.memory_space<vmem>>, vector<256x96xf32>
      %c0_12 = arith.constant 0 : index
      %c0_13 = arith.constant 0 : index
      %13 = vector.load %arg5[%c0_12, %c0_13] : memref<1x96xf32, #tpu.memory_space<vmem>>, vector<1x96xf32>
      %14 = vector.broadcast %13 : vector<1x96xf32> to vector<256x96xf32>
      %15 = arith.addf %12, %14 : vector<256x96xf32>
      %16 = arith.truncf %15 : vector<256x96xf32> to vector<256x96xbf16>
      %c0_14 = arith.constant 0 : index
      %c0_15 = arith.constant 0 : index
      %17 = vector.load %arg6[%c0_14, %c0_15] : memref<256x96xbf16, #tpu.memory_space<vmem>>, vector<256x96xbf16>
      tpu.vector_store %arg6[%c0_14, %c0_15], %16 {strides = array<i32>} : memref<256x96xbf16, #tpu.memory_space<vmem>>, vector<256x96xbf16>,
    } else {
    }
    return
  }
  func.func @transform_0(%arg0: i32, %arg1: i32, %arg2: i32) -> (i32, i32) {
    %c0_i32 = arith.constant 0 : i32
    return %arg0, %arg2 : i32, i32
  }
  func.func @transform_1(%arg0: i32, %arg1: i32, %arg2: i32) -> (i32, i32) {
    %c0_i32 = arith.constant 0 : i32
    return %arg2, %arg1 : i32, i32
  }
  func.func @transform_2(%arg0: i32, %arg1: i32, %arg2: i32) -> (i32, i32) {
    %c0_i32 = arith.constant 0 : i32
    %c0_i32_0 = arith.constant 0 : i32
    return %c0_i32, %arg1 : i32, i32
  }
  func.func @transform_3(%arg0: i32, %arg1: i32, %arg2: i32) -> (i32, i32) {
    %c0_i32 = arith.constant 0 : i32
    return %arg0, %arg1 : i32, i32
  }
}

</mosaic_0001>

<llo_original>
// kernel: tpu_custom_call.1
$region0: #{tpu_custom_call.1}
  #allocation0 [shape = 'u32[]', space=smem, size = 0x4, offset = 0x4, fixed_abs, tag = 'smem constant byte address 0x4 - core index']
  #allocation1 [shape = 'u32[144,128]{1,0:T(1,128)}', space=vmem, size = 0x12000, scoped, tag = 'internal scratch']
  #allocation2 [shape = 'f32[256,96]{1,0:T(8,128)}', space=vmem, size = 0x20000, scoped, tag = 'scratch operand']
  %s0 = inlined_call_operand.vmem [shape: bf16[256,32], index: 0, kind: input, shape index: {}]
  %s1 = inlined_call_operand.vmem [shape: bf16[32,96], index: 1, kind: input, shape index: {}]
  %s2 = inlined_call_operand.vmem [shape: f32[1,96], index: 2, kind: input, shape index: {}]
  %s3 = inlined_call_operand.vmem [shape: bf16[256,96], index: 3, kind: output, shape index: {}]
  %s4 = sld [smem:[#allocation0]]
  $region30: #{tpu_custom_call.1} parent=0
    _
  %s6 = ssub.s32 1, %s4
  %s7 = scalar_select 0, %s6, %s4
  // Predicated region
  $region2: #{tpu_custom_call.1} parent=0 // pred_check
    _
  $region3: #{tpu_custom_call.1} parent=0 // pred_check_branch
    %9 = sbr.rel (0) target = $region5
  $region4: #{tpu_custom_call.1} parent=0 // pred_region
    _
  $region5: #{tpu_custom_call.1} parent=0 // pred_fallthru
    _
  // Predicated region
  $region6: #{tpu_custom_call.1} parent=0 // pred_check
    _
  $region7: #{tpu_custom_call.1} parent=0 // pred_check_branch
    %11 = sbr.rel (0) target = $region9
  $region8: #{tpu_custom_call.1} parent=0 // pred_region
    _
  $region9: #{tpu_custom_call.1} parent=0 // pred_fallthru
    _
  // Predicated region
  $region10: #{tpu_custom_call.1} parent=0 // pred_check
    _
  $region11: #{tpu_custom_call.1} parent=0 // pred_check_branch
    %13 = sbr.rel (0) target = $region13
  $region12: #{tpu_custom_call.1} parent=0 // pred_region
    _
  $region13: #{tpu_custom_call.1} parent=0 // pred_fallthru
    _
  %p15 = scmp.eq.s32.totalorder 0, 0
  // Predicated region
  $region14: #{tpu_custom_call.1} parent=0 // pred_check
    %p16 = pneg %p15
  $region15: #{tpu_custom_call.1} parent=0 // pred_check_branch
    %18 = sbr.rel (%p16) target = $region17
  $region16: #{tpu_custom_call.1} parent=0 // pred_region
    %vm19 = vcmask 785408
    %20 = vst.msk [vmem:[#allocation2] sm:$0xff] %vm19, 0.0
    %21 = vst.msk [vmem:[#allocation2 + $0x8] sm:$0xff] %vm19, 0.0
    %22 = vst.msk [vmem:[#allocation2 + $0x10] sm:$0xff] %vm19, 0.0
    %23 = vst.msk [vmem:[#allocation2 + $0x18] sm:$0xff] %vm19, 0.0
    %24 = vst.msk [vmem:[#allocation2 + $0x20] sm:$0xff] %vm19, 0.0
    %25 = vst.msk [vmem:[#allocation2 + $0x28] sm:$0xff] %vm19, 0.0
    %26 = vst.msk [vmem:[#allocation2 + $0x30] sm:$0xff] %vm19, 0.0
    %27 = vst.msk [vmem:[#allocation2 + $0x38] sm:$0xff] %vm19, 0.0
    %28 = vst.msk [vmem:[#allocation2 + $0x40] sm:$0xff] %vm19, 0.0
    %29 = vst.msk [vmem:[#allocation2 + $0x48] sm:$0xff] %vm19, 0.0
    %30 = vst.msk [vmem:[#allocation2 + $0x50] sm:$0xff] %vm19, 0.0
    %31 = vst.msk [vmem:[#allocation2 + $0x58] sm:$0xff] %vm19, 0.0
    %32 = vst.msk [vmem:[#allocation2 + $0x60] sm:$0xff] %vm19, 0.0
    %33 = vst.msk [vmem:[#allocation2 + $0x68] sm:$0xff] %vm19, 0.0
    %34 = vst.msk [vmem:[#allocation2 + $0x70] sm:$0xff] %vm19, 0.0
    %35 = vst.msk [vmem:[#allocation2 + $0x78] sm:$0xff] %vm19, 0.0
    %36 = vst.msk [vmem:[#allocation2 + $0x80] sm:$0xff] %vm19, 0.0
    %37 = vst.msk [vmem:[#allocation2 + $0x88] sm:$0xff] %vm19, 0.0
    %38 = vst.msk [vmem:[#allocation2 + $0x90] sm:$0xff] %vm19, 0.0
    %39 = vst.msk [vmem:[#allocation2 + $0x98] sm:$0xff] %vm19, 0.0
    %40 = vst.msk [vmem:[#allocation2 + $0xa0] sm:$0xff] %vm19, 0.0
    %41 = vst.msk [vmem:[#allocation2 + $0xa8] sm:$0xff] %vm19, 0.0
    %42 = vst.msk [vmem:[#allocation2 + $0xb0] sm:$0xff] %vm19, 0.0
    %43 = vst.msk [vmem:[#allocation2 + $0xb8] sm:$0xff] %vm19, 0.0
    %44 = vst.msk [vmem:[#allocation2 + $0xc0] sm:$0xff] %vm19, 0.0
    %45 = vst.msk [vmem:[#allocation2 + $0xc8] sm:$0xff] %vm19, 0.0
    %46 = vst.msk [vmem:[#allocation2 + $0xd0] sm:$0xff] %vm19, 0.0
    %47 = vst.msk [vmem:[#allocation2 + $0xd8] sm:$0xff] %vm19, 0.0
    %48 = vst.msk [vmem:[#allocation2 + $0xe0] sm:$0xff] %vm19, 0.0
    %49 = vst.msk [vmem:[#allocation2 + $0xe8] sm:$0xff] %vm19, 0.0
    %50 = vst.msk [vmem:[#allocation2 + $0xf0] sm:$0xff] %vm19, 0.0
    %51 = vst.msk [vmem:[#allocation2 + $0xf8] sm:$0xff] %vm19, 0.0
  $region17: #{tpu_custom_call.1} parent=0 // pred_fallthru
    _
  %v52 = vld [vmem:[#allocation2] sm:$0xff]
  %v53 = vld [vmem:[#allocation2 + $0x8] sm:$0xff]
  %v54 = vld [vmem:[#allocation2 + $0x10] sm:$0xff]
  %v55 = vld [vmem:[#allocation2 + $0x18] sm:$0xff]
  %v56 = vld [vmem:[#allocation2 + $0x20] sm:$0xff]
  %v57 = vld [vmem:[#allocation2 + $0x28] sm:$0xff]
  %v58 = vld [vmem:[#allocation2 + $0x30] sm:$0xff]
  %v59 = vld [vmem:[#allocation2 + $0x38] sm:$0xff]
  %v60 = vld [vmem:[#allocation2 + $0x40] sm:$0xff]
  %v61 = vld [vmem:[#allocation2 + $0x48] sm:$0xff]
  %v62 = vld [vmem:[#allocation2 + $0x50] sm:$0xff]
  %v63 = vld [vmem:[#allocation2 + $0x58] sm:$0xff]
  %v64 = vld [vmem:[#allocation2 + $0x60] sm:$0xff]
  %v65 = vld [vmem:[#allocation2 + $0x68] sm:$0xff]
  %v66 = vld [vmem:[#allocation2 + $0x70] sm:$0xff]
  %v67 = vld [vmem:[#allocation2 + $0x78] sm:$0xff]
  %v68 = vld [vmem:[#allocation2 + $0x80] sm:$0xff]
  %v69 = vld [vmem:[#allocation2 + $0x88] sm:$0xff]
  %v70 = vld [vmem:[#allocation2 + $0x90] sm:$0xff]
  %v71 = vld [vmem:[#allocation2 + $0x98] sm:$0xff]
  %v72 = vld [vmem:[#allocation2 + $0xa0] sm:$0xff]
  %v73 = vld [vmem:[#allocation2 + $0xa8] sm:$0xff]
  %v74 = vld [vmem:[#allocation2 + $0xb0] sm:$0xff]
  %v75 = vld [vmem:[#allocation2 + $0xb8] sm:$0xff]
  %v76 = vld [vmem:[#allocation2 + $0xc0] sm:$0xff]
  %v77 = vld [vmem:[#allocation2 + $0xc8] sm:$0xff]
  %v78 = vld [vmem:[#allocation2 + $0xd0] sm:$0xff]
  %v79 = vld [vmem:[#allocation2 + $0xd8] sm:$0xff]
  %v80 = vld [vmem:[#allocation2 + $0xe0] sm:$0xff]
  %v81 = vld [vmem:[#allocation2 + $0xe8] sm:$0xff]
  %v82 = vld [vmem:[#allocation2 + $0xf0] sm:$0xff]
  %v83 = vld [vmem:[#allocation2 + $0xf8] sm:$0xff]
  %v84 = vld [vmem:[%s0] sm:$0xf]
  %v85 = vld [vmem:[%s0 + $0x4] sm:$0xf]
  %v86 = vld [vmem:[%s0 + $0x8] sm:$0xf]
  %v87 = vld [vmem:[%s0 + $0xc] sm:$0xf]
  %v88 = vld [vmem:[%s0 + $0x10] sm:$0xf]
  %v89 = vld [vmem:[%s0 + $0x14] sm:$0xf]
  %v90 = vld [vmem:[%s0 + $0x18] sm:$0xf]
  %v91 = vld [vmem:[%s0 + $0x1c] sm:$0xf]
  %v92 = vld [vmem:[%s0 + $0x20] sm:$0xf]
  %v93 = vld [vmem:[%s0 + $0x24] sm:$0xf]
  %v94 = vld [vmem:[%s0 + $0x28] sm:$0xf]
  %v95 = vld [vmem:[%s0 + $0x2c] sm:$0xf]
  %v96 = vld [vmem:[%s0 + $0x30] sm:$0xf]
  %v97 = vld [vmem:[%s0 + $0x34] sm:$0xf]
  %v98 = vld [vmem:[%s0 + $0x38] sm:$0xf]
  %v99 = vld [vmem:[%s0 + $0x3c] sm:$0xf]
  %v100 = vld [vmem:[%s0 + $0x40] sm:$0xf]
  %v101 = vld [vmem:[%s0 + $0x44] sm:$0xf]
  %v102 = vld [vmem:[%s0 + $0x48] sm:$0xf]
  %v103 = vld [vmem:[%s0 + $0x4c] sm:$0xf]
  %v104 = vld [vmem:[%s0 + $0x50] sm:$0xf]
  %v105 = vld [vmem:[%s0 + $0x54] sm:$0xf]
  %v106 = vld [vmem:[%s0 + $0x58] sm:$0xf]
  %v107 = vld [vmem:[%s0 + $0x5c] sm:$0xf]
  %v108 = vld [vmem:[%s0 + $0x60] sm:$0xf]
  %v109 = vld [vmem:[%s0 + $0x64] sm:$0xf]
  %v110 = vld [vmem:[%s0 + $0x68] sm:$0xf]
  %v111 = vld [vmem:[%s0 + $0x6c] sm:$0xf]
  %v112 = vld [vmem:[%s0 + $0x70] sm:$0xf]
  %v113 = vld [vmem:[%s0 + $0x74] sm:$0xf]
  %v114 = vld [vmem:[%s0 + $0x78] sm:$0xf]
  %v115 = vld [vmem:[%s0 + $0x7c] sm:$0xf]
  %v116 = vld [vmem:[%s1] sm:$0xf]
  %v117 = vld [vmem:[%s1 + $0x4] sm:$0xf]
  %v118 = vld [vmem:[%s1 + $0x8] sm:$0xf]
  %v119 = vld [vmem:[%s1 + $0xc] sm:$0xf]
  %v152 = vunpack.c.l.b16 %v84
  %v153 = vunpack.c.l.b16 %v85
  %v154 = vunpack.c.l.b16 %v86
  %v155 = vunpack.c.l.b16 %v87
  %v156 = vunpack.c.l.b16 %v88
  %v157 = vunpack.c.l.b16 %v89
  %v158 = vunpack.c.l.b16 %v90
  %v159 = vunpack.c.l.b16 %v91
  %v160 = vunpack.c.l.b16 %v92
  %v161 = vunpack.c.l.b16 %v93
  %v162 = vunpack.c.l.b16 %v94
  %v163 = vunpack.c.l.b16 %v95
  %v164 = vunpack.c.l.b16 %v96
  %v165 = vunpack.c.l.b16 %v97
  %v166 = vunpack.c.l.b16 %v98
  %v167 = vunpack.c.l.b16 %v99
  %v168 = vunpack.c.l.b16 %v100
  %v169 = vunpack.c.l.b16 %v101
  %v170 = vunpack.c.l.b16 %v102
  %v171 = vunpack.c.l.b16 %v103
  %v172 = vunpack.c.l.b16 %v104
  %v173 = vunpack.c.l.b16 %v105
  %v174 = vunpack.c.l.b16 %v106
  %v175 = vunpack.c.l.b16 %v107
  %v176 = vunpack.c.l.b16 %v108
  %v177 = vunpack.c.l.b16 %v109
  %v178 = vunpack.c.l.b16 %v110
  %v179 = vunpack.c.l.b16 %v111
  %v180 = vunpack.c.l.b16 %v112
  %v181 = vunpack.c.l.b16 %v113
  %v182 = vunpack.c.l.b16 %v114
  %v183 = vunpack.c.l.b16 %v115
  %v184 = vpack.c.b16 %v153, %v152
  %v185 = vpack.c.b16 %v155, %v154
  %v186 = vpack.c.b16 %v157, %v156
  %v187 = vpack.c.b16 %v159, %v158
  %v188 = vpack.c.b16 %v161, %v160
  %v189 = vpack.c.b16 %v163, %v162
  %v190 = vpack.c.b16 %v165, %v164
  %v191 = vpack.c.b16 %v167, %v166
  %v192 = vpack.c.b16 %v169, %v168
  %v193 = vpack.c.b16 %v171, %v170
  %v194 = vpack.c.b16 %v173, %v172
  %v195 = vpack.c.b16 %v175, %v174
  %v196 = vpack.c.b16 %v177, %v176
  %v197 = vpack.c.b16 %v179, %v178
  %v198 = vpack.c.b16 %v181, %v180
  %v199 = vpack.c.b16 %v183, %v182
  %v204 = vunpack.c.l.b16 %v116
  %v205 = vunpack.c.l.b16 %v117
  %v206 = vunpack.c.l.b16 %v118
  %v207 = vunpack.c.l.b16 %v119
  %v208 = vpack.c.b16 %v205, %v204
  %v209 = vpack.c.b16 %v207, %v206
  %vm212 = vcmask 261120
  %v214 = vsel %vm212, %v184, 0
  %v217 = vsel %vm212, %v185, 0
  %v220 = vsel %vm212, %v186, 0
  %v223 = vsel %vm212, %v187, 0
  %v226 = vsel %vm212, %v188, 0
  %v229 = vsel %vm212, %v189, 0
  %v232 = vsel %vm212, %v190, 0
  %v235 = vsel %vm212, %v191, 0
  %v238 = vsel %vm212, %v192, 0
  %v241 = vsel %vm212, %v193, 0
  %v244 = vsel %vm212, %v194, 0
  %v247 = vsel %vm212, %v195, 0
  %v250 = vsel %vm212, %v196, 0
  %v253 = vsel %vm212, %v197, 0
  %v256 = vsel %vm212, %v198, 0
  %v259 = vsel %vm212, %v199, 0
  %261 = vmatprep.subr.bf16.mxu0 0
  %262 = vmatpush1.bf16.msra.mxu0 0
  %263 = vmatprep.subr.bf16.mxu0 0
  %264 = vmatpush1.bf16.msra.mxu0 0
  %265 = vmatprep.subr.bf16.mxu0 0
  %266 = vmatpush1.bf16.msra.mxu0 0
  %267 = vmatprep.subr.bf16.mxu0 0
  %268 = vmatpush1.bf16.msra.mxu0 0
  %269 = vmatprep.subr.bf16.mxu0 0
  %270 = vmatpush1.bf16.msra.mxu0 0
  %271 = vmatprep.subr.bf16.mxu0 0
  %272 = vmatpush1.bf16.msra.mxu0 0
  %273 = vmatprep.subr.bf16.mxu0 0
  %274 = vmatpush1.bf16.msra.mxu0 %v209
  %275 = vmatprep.subr.bf16.mxu0 0
  %276 = vmatpush1.bf16.msra.mxu0 %v208
  %277 = vmatprep.subr.bf16.mxu0 0
  %278 = vmatpush2.bf16.msra.mxu0 0
  %279 = vmatprep.subr.bf16.mxu0 0
  %280 = vmatpush2.bf16.msra.mxu0 0
  %281 = vmatprep.subr.bf16.mxu0 0
  %282 = vmatpush2.bf16.msra.mxu0 0
  %283 = vmatprep.subr.bf16.mxu0 0
  %284 = vmatpush2.bf16.msra.mxu0 0
  %285 = vmatprep.subr.bf16.mxu0 0
  %286 = vmatpush2.bf16.msra.mxu0 0
  %287 = vmatprep.subr.bf16.mxu0 0
  %288 = vmatpush2.bf16.msra.mxu0 0
  %289 = vmatprep.subr.bf16.mxu0 0
  %290 = vmatpush2.bf16.msra.mxu0 0
  %291 = vmatprep.subr.bf16.mxu0 0
  %292 = vmatpush2.bf16.msra.mxu0 0
  %293 = vmatprep.mubr.bf16.mxu0 0
  %294 = vmatmul.mubr.bf16.gmra.mxu0 %v214
  %v295 = vpop.f32.mrf.mxu0
  %v296 = vadd.f32 0.0, %v295
  %v297 = vpop.f32.mrf.mxu0
  %v298 = vpop.f32.mrf.mxu0
  %v299 = vadd.f32 0.0, %v298
  %v300 = vpop.f32.mrf.mxu0
  %301 = vmatprep.mubr.bf16.mxu0 0
  %302 = vmatmul.mubr.bf16.gmra.mxu0 %v217
  %v303 = vpop.f32.mrf.mxu0
  %v304 = vadd.f32 0.0, %v303
  %v305 = vpop.f32.mrf.mxu0
  %v306 = vpop.f32.mrf.mxu0
  %v307 = vadd.f32 0.0, %v306
  %v308 = vpop.f32.mrf.mxu0
  %309 = vmatprep.mubr.bf16.mxu0 0
  %310 = vmatmul.mubr.bf16.gmra.mxu0 %v220
  %v311 = vpop.f32.mrf.mxu0
  %v312 = vadd.f32 0.0, %v311
  %v313 = vpop.f32.mrf.mxu0
  %v314 = vpop.f32.mrf.mxu0
  %v315 = vadd.f32 0.0, %v314
  %v316 = vpop.f32.mrf.mxu0
  %317 = vmatprep.mubr.bf16.mxu0 0
  %318 = vmatmul.mubr.bf16.gmra.mxu0 %v223
  %v319 = vpop.f32.mrf.mxu0
  %v320 = vadd.f32 0.0, %v319
  %v321 = vpop.f32.mrf.mxu0
  %v322 = vpop.f32.mrf.mxu0
  %v323 = vadd.f32 0.0, %v322
  %v324 = vpop.f32.mrf.mxu0
  %325 = vmatprep.mubr.bf16.mxu0 0
  %326 = vmatmul.mubr.bf16.gmra.mxu0 %v226
  %v327 = vpop.f32.mrf.mxu0
  %v328 = vadd.f32 0.0, %v327
  %v329 = vpop.f32.mrf.mxu0
  %v330 = vpop.f32.mrf.mxu0
  %v331 = vadd.f32 0.0, %v330
  %v332 = vpop.f32.mrf.mxu0
  %333 = vmatprep.mubr.bf16.mxu0 0
  %334 = vmatmul.mubr.bf16.gmra.mxu0 %v229
  %v335 = vpop.f32.mrf.mxu0
  %v336 = vadd.f32 0.0, %v335
  %v337 = vpop.f32.mrf.mxu0
  %v338 = vpop.f32.mrf.mxu0
  %v339 = vadd.f32 0.0, %v338
  %v340 = vpop.f32.mrf.mxu0
  %341 = vmatprep.mubr.bf16.mxu0 0
  %342 = vmatmul.mubr.bf16.gmra.mxu0 %v232
  %v343 = vpop.f32.mrf.mxu0
  %v344 = vadd.f32 0.0, %v343
  %v345 = vpop.f32.mrf.mxu0
  %v346 = vpop.f32.mrf.mxu0
  %v347 = vadd.f32 0.0, %v346
  %v348 = vpop.f32.mrf.mxu0
  %349 = vmatprep.mubr.bf16.mxu0 0
  %350 = vmatmul.mubr.bf16.gmra.mxu0 %v235
  %v351 = vpop.f32.mrf.mxu0
  %v352 = vadd.f32 0.0, %v351
  %v353 = vpop.f32.mrf.mxu0
  %v354 = vpop.f32.mrf.mxu0
  %v355 = vadd.f32 0.0, %v354
  %v356 = vpop.f32.mrf.mxu0
  %357 = vmatprep.mubr.bf16.mxu0 0
  %358 = vmatmul.mubr.bf16.gmra.mxu0 %v238
  %v359 = vpop.f32.mrf.mxu0
  %v360 = vadd.f32 0.0, %v359
  %v361 = vpop.f32.mrf.mxu0
  %v362 = vpop.f32.mrf.mxu0
  %v363 = vadd.f32 0.0, %v362
  %v364 = vpop.f32.mrf.mxu0
  %365 = vmatprep.mubr.bf16.mxu0 0
  %366 = vmatmul.mubr.bf16.gmra.mxu0 %v241
  %v367 = vpop.f32.mrf.mxu0
  %v368 = vadd.f32 0.0, %v367
  %v369 = vpop.f32.mrf.mxu0
  %v370 = vpop.f32.mrf.mxu0
  %v371 = vadd.f32 0.0, %v370
  %v372 = vpop.f32.mrf.mxu0
  %373 = vmatprep.mubr.bf16.mxu0 0
  %374 = vmatmul.mubr.bf16.gmra.mxu0 %v244
  %v375 = vpop.f32.mrf.mxu0
  %v376 = vadd.f32 0.0, %v375
  %v377 = vpop.f32.mrf.mxu0
  %v378 = vpop.f32.mrf.mxu0
  %v379 = vadd.f32 0.0, %v378
  %v380 = vpop.f32.mrf.mxu0
  %381 = vmatprep.mubr.bf16.mxu0 0
  %382 = vmatmul.mubr.bf16.gmra.mxu0 %v247
  %v383 = vpop.f32.mrf.mxu0
  %v384 = vadd.f32 0.0, %v383
  %v385 = vpop.f32.mrf.mxu0
  %v386 = vpop.f32.mrf.mxu0
  %v387 = vadd.f32 0.0, %v386
  %v388 = vpop.f32.mrf.mxu0
  %389 = vmatprep.mubr.bf16.mxu0 0
  %390 = vmatmul.mubr.bf16.gmra.mxu0 %v250
  %v391 = vpop.f32.mrf.mxu0
  %v392 = vadd.f32 0.0, %v391
  %v393 = vpop.f32.mrf.mxu0
  %v394 = vpop.f32.mrf.mxu0
  %v395 = vadd.f32 0.0, %v394
  %v396 = vpop.f32.mrf.mxu0
  %397 = vmatprep.mubr.bf16.mxu0 0
  %398 = vmatmul.mubr.bf16.gmra.mxu0 %v253
  %v399 = vpop.f32.mrf.mxu0
  %v400 = vadd.f32 0.0, %v399
  %v401 = vpop.f32.mrf.mxu0
  %v402 = vpop.f32.mrf.mxu0
  %v403 = vadd.f32 0.0, %v402
  %v404 = vpop.f32.mrf.mxu0
  %405 = vmatprep.mubr.bf16.mxu0 0
  %406 = vmatmul.mubr.bf16.gmra.mxu0 %v256
  %v407 = vpop.f32.mrf.mxu0
  %v408 = vadd.f32 0.0, %v407
  %v409 = vpop.f32.mrf.mxu0
  %v410 = vpop.f32.mrf.mxu0
  %v411 = vadd.f32 0.0, %v410
  %v412 = vpop.f32.mrf.mxu0
  %413 = vmatprep.mubr.bf16.mxu0 0
  %414 = vmatmul.mubr.bf16.gmra.mxu0 %v259
  %v415 = vpop.f32.mrf.mxu0
  %v416 = vadd.f32 0.0, %v415
  %v417 = vpop.f32.mrf.mxu0
  %v418 = vpop.f32.mrf.mxu0
  %v419 = vadd.f32 0.0, %v418
  %v420 = vpop.f32.mrf.mxu0
  %421 = vdwg.mxu0
  %v422 = vadd.f32 %v52, %v296
  %v423 = vadd.f32 %v53, %v299
  %v424 = vadd.f32 %v54, %v304
  %v425 = vadd.f32 %v55, %v307
  %v426 = vadd.f32 %v56, %v312
  %v427 = vadd.f32 %v57, %v315
  %v428 = vadd.f32 %v58, %v320
  %v429 = vadd.f32 %v59, %v323
  %v430 = vadd.f32 %v60, %v328
  %v431 = vadd.f32 %v61, %v331
  %v432 = vadd.f32 %v62, %v336
  %v433 = vadd.f32 %v63, %v339
  %v434 = vadd.f32 %v64, %v344
  %v435 = vadd.f32 %v65, %v347
  %v436 = vadd.f32 %v66, %v352
  %v437 = vadd.f32 %v67, %v355
  %v438 = vadd.f32 %v68, %v360
  %v439 = vadd.f32 %v69, %v363
  %v440 = vadd.f32 %v70, %v368
  %v441 = vadd.f32 %v71, %v371
  %v442 = vadd.f32 %v72, %v376
  %v443 = vadd.f32 %v73, %v379
  %v444 = vadd.f32 %v74, %v384
  %v445 = vadd.f32 %v75, %v387
  %v446 = vadd.f32 %v76, %v392
  %v447 = vadd.f32 %v77, %v395
  %v448 = vadd.f32 %v78, %v400
  %v449 = vadd.f32 %v79, %v403
  %v450 = vadd.f32 %v80, %v408
  %v451 = vadd.f32 %v81, %v411
  %v452 = vadd.f32 %v82, %v416
  %v453 = vadd.f32 %v83, %v419
  %vm454 = vcmask 785408
  %455 = vst.msk [vmem:[#allocation2] sm:$0xff] %vm454, %v422
  %456 = vst.msk [vmem:[#allocation2 + $0x8] sm:$0xff] %vm454, %v423
  %457 = vst.msk [vmem:[#allocation2 + $0x10] sm:$0xff] %vm454, %v424
  %458 = vst.msk [vmem:[#allocation2 + $0x18] sm:$0xff] %vm454, %v425
  %459 = vst.msk [vmem:[#allocation2 + $0x20] sm:$0xff] %vm454, %v426
  %460 = vst.msk [vmem:[#allocation2 + $0x28] sm:$0xff] %vm454, %v427
  %461 = vst.msk [vmem:[#allocation2 + $0x30] sm:$0xff] %vm454, %v428
  %462 = vst.msk [vmem:[#allocation2 + $0x38] sm:$0xff] %vm454, %v429
  %463 = vst.msk [vmem:[#allocation2 + $0x40] sm:$0xff] %vm454, %v430
  %464 = vst.msk [vmem:[#allocation2 + $0x48] sm:$0xff] %vm454, %v431
  %465 = vst.msk [vmem:[#allocation2 + $0x50] sm:$0xff] %vm454, %v432
  %466 = vst.msk [vmem:[#allocation2 + $0x58] sm:$0xff] %vm454, %v433
  %467 = vst.msk [vmem:[#allocation2 + $0x60] sm:$0xff] %vm454, %v434
  %468 = vst.msk [vmem:[#allocation2 + $0x68] sm:$0xff] %vm454, %v435
  %469 = vst.msk [vmem:[#allocation2 + $0x70] sm:$0xff] %vm454, %v436
  %470 = vst.msk [vmem:[#allocation2 + $0x78] sm:$0xff] %vm454, %v437
  %471 = vst.msk [vmem:[#allocation2 + $0x80] sm:$0xff] %vm454, %v438
  %472 = vst.msk [vmem:[#allocation2 + $0x88] sm:$0xff] %vm454, %v439
  %473 = vst.msk [vmem:[#allocation2 + $0x90] sm:$0xff] %vm454, %v440
  %474 = vst.msk [vmem:[#allocation2 + $0x98] sm:$0xff] %vm454, %v441
  %475 = vst.msk [vmem:[#allocation2 + $0xa0] sm:$0xff] %vm454, %v442
  %476 = vst.msk [vmem:[#allocation2 + $0xa8] sm:$0xff] %vm454, %v443
  %477 = vst.msk [vmem:[#allocation2 + $0xb0] sm:$0xff] %vm454, %v444
  %478 = vst.msk [vmem:[#allocation2 + $0xb8] sm:$0xff] %vm454, %v445
  %479 = vst.msk [vmem:[#allocation2 + $0xc0] sm:$0xff] %vm454, %v446
  %480 = vst.msk [vmem:[#allocation2 + $0xc8] sm:$0xff] %vm454, %v447
  %481 = vst.msk [vmem:[#allocation2 + $0xd0] sm:$0xff] %vm454, %v448
  %482 = vst.msk [vmem:[#allocation2 + $0xd8] sm:$0xff] %vm454, %v449
  %483 = vst.msk [vmem:[#allocation2 + $0xe0] sm:$0xff] %vm454, %v450
  %484 = vst.msk [vmem:[#allocation2 + $0xe8] sm:$0xff] %vm454, %v451
  %485 = vst.msk [vmem:[#allocation2 + $0xf0] sm:$0xff] %vm454, %v452
  %486 = vst.msk [vmem:[#allocation2 + $0xf8] sm:$0xff] %vm454, %v453
  // Predicated region
  $region18: #{tpu_custom_call.1} parent=0 // pred_check
    %p487 = pneg %p15
  $region19: #{tpu_custom_call.1} parent=0 // pred_check_branch
    %489 = sbr.rel (%p487) target = $region21
  $region20: #{tpu_custom_call.1} parent=0 // pred_region
    %v490 = vld [vmem:[#allocation2] sm:$0xff]
    %v491 = vld [vmem:[#allocation2 + $0x8] sm:$0xff]
    %v492 = vld [vmem:[#allocation2 + $0x10] sm:$0xff]
    %v493 = vld [vmem:[#allocation2 + $0x18] sm:$0xff]
    %v494 = vld [vmem:[#allocation2 + $0x20] sm:$0xff]
    %v495 = vld [vmem:[#allocation2 + $0x28] sm:$0xff]
    %v496 = vld [vmem:[#allocation2 + $0x30] sm:$0xff]
    %v497 = vld [vmem:[#allocation2 + $0x38] sm:$0xff]
    %v498 = vld [vmem:[#allocation2 + $0x40] sm:$0xff]
    %v499 = vld [vmem:[#allocation2 + $0x48] sm:$0xff]
    %v500 = vld [vmem:[#allocation2 + $0x50] sm:$0xff]
    %v501 = vld [vmem:[#allocation2 + $0x58] sm:$0xff]
    %v502 = vld [vmem:[#allocation2 + $0x60] sm:$0xff]
    %v503 = vld [vmem:[#allocation2 + $0x68] sm:$0xff]
    %v504 = vld [vmem:[#allocation2 + $0x70] sm:$0xff]
    %v505 = vld [vmem:[#allocation2 + $0x78] sm:$0xff]
    %v506 = vld [vmem:[#allocation2 + $0x80] sm:$0xff]
    %v507 = vld [vmem:[#allocation2 + $0x88] sm:$0xff]
    %v508 = vld [vmem:[#allocation2 + $0x90] sm:$0xff]
    %v509 = vld [vmem:[#allocation2 + $0x98] sm:$0xff]
    %v510 = vld [vmem:[#allocation2 + $0xa0] sm:$0xff]
    %v511 = vld [vmem:[#allocation2 + $0xa8] sm:$0xff]
    %v512 = vld [vmem:[#allocation2 + $0xb0] sm:$0xff]
    %v513 = vld [vmem:[#allocation2 + $0xb8] sm:$0xff]
    %v514 = vld [vmem:[#allocation2 + $0xc0] sm:$0xff]
    %v515 = vld [vmem:[#allocation2 + $0xc8] sm:$0xff]
    %v516 = vld [vmem:[#allocation2 + $0xd0] sm:$0xff]
    %v517 = vld [vmem:[#allocation2 + $0xd8] sm:$0xff]
    %v518 = vld [vmem:[#allocation2 + $0xe0] sm:$0xff]
    %v519 = vld [vmem:[#allocation2 + $0xe8] sm:$0xff]
    %v520 = vld [vmem:[#allocation2 + $0xf0] sm:$0xff]
    %v521 = vld [vmem:[#allocation2 + $0xf8] sm:$0xff]
    %v522 = vld [vmem:[%s2] sm:$0x1]
    %v524 = vlaneseq
    %v525 = vshrl.u32 %v524, 7
    %v526 = vsub.s32 0, %v525
    %v527 = vrot.slane %v522, %v526
    %v529 = vadd.f32 %v490, %v527
    %v530 = vadd.f32 %v491, %v527
    %v531 = vadd.f32 %v492, %v527
    %v532 = vadd.f32 %v493, %v527
    %v533 = vadd.f32 %v494, %v527
    %v534 = vadd.f32 %v495, %v527
    %v535 = vadd.f32 %v496, %v527
    %v536 = vadd.f32 %v497, %v527
    %v537 = vadd.f32 %v498, %v527
    %v538 = vadd.f32 %v499, %v527
    %v539 = vadd.f32 %v500, %v527
    %v540 = vadd.f32 %v501, %v527
    %v541 = vadd.f32 %v502, %v527
    %v542 = vadd.f32 %v503, %v527
    %v543 = vadd.f32 %v504, %v527
    %v544 = vadd.f32 %v505, %v527
    %v545 = vadd.f32 %v506, %v527
    %v546 = vadd.f32 %v507, %v527
    %v547 = vadd.f32 %v508, %v527
    %v548 = vadd.f32 %v509, %v527
    %v549 = vadd.f32 %v510, %v527
    %v550 = vadd.f32 %v511, %v527
    %v551 = vadd.f32 %v512, %v527
    %v552 = vadd.f32 %v513, %v527
    %v553 = vadd.f32 %v514, %v527
    %v554 = vadd.f32 %v515, %v527
    %v555 = vadd.f32 %v516, %v527
    %v556 = vadd.f32 %v517, %v527
    %v557 = vadd.f32 %v518, %v527
    %v558 = vadd.f32 %v519, %v527
    %v559 = vadd.f32 %v520, %v527
    %v560 = vadd.f32 %v521, %v527
    %v561 = vpack.c.bf16 %v530, %v529
    %v562 = vpack.c.bf16 %v532, %v531
    %v563 = vpack.c.bf16 %v534, %v533
    %v564 = vpack.c.bf16 %v536, %v535
    %v565 = vpack.c.bf16 %v538, %v537
    %v566 = vpack.c.bf16 %v540, %v539
    %v567 = vpack.c.bf16 %v542, %v541
    %v568 = vpack.c.bf16 %v544, %v543
    %v569 = vpack.c.bf16 %v546, %v545
    %v570 = vpack.c.bf16 %v548, %v547
    %v571 = vpack.c.bf16 %v550, %v549
    %v572 = vpack.c.bf16 %v552, %v551
    %v573 = vpack.c.bf16 %v554, %v553
    %v574 = vpack.c.bf16 %v556, %v555
    %v575 = vpack.c.bf16 %v558, %v557
    %v576 = vpack.c.bf16 %v560, %v559
    %v593 = vunpack.c.l.b16 %v561
    %v594 = vunpack.c.h.b16 %v561
    %v595 = vunpack.c.l.b16 %v562
    %v596 = vunpack.c.h.b16 %v562
    %v597 = vunpack.c.l.b16 %v563
    %v598 = vunpack.c.h.b16 %v563
    %v599 = vunpack.c.l.b16 %v564
    %v600 = vunpack.c.h.b16 %v564
    %v601 = vunpack.c.l.b16 %v565
    %v602 = vunpack.c.h.b16 %v565
    %v603 = vunpack.c.l.b16 %v566
    %v604 = vunpack.c.h.b16 %v566
    %v605 = vunpack.c.l.b16 %v567
    %v606 = vunpack.c.h.b16 %v567
    %v607 = vunpack.c.l.b16 %v568
    %v608 = vunpack.c.h.b16 %v568
    %v609 = vunpack.c.l.b16 %v569
    %v610 = vunpack.c.h.b16 %v569
    %v611 = vunpack.c.l.b16 %v570
    %v612 = vunpack.c.h.b16 %v570
    %v613 = vunpack.c.l.b16 %v571
    %v614 = vunpack.c.h.b16 %v571
    %v615 = vunpack.c.l.b16 %v572
    %v616 = vunpack.c.h.b16 %v572
    %v617 = vunpack.c.l.b16 %v573
    %v618 = vunpack.c.h.b16 %v573
    %v619 = vunpack.c.l.b16 %v574
    %v620 = vunpack.c.h.b16 %v574
    %v621 = vunpack.c.l.b16 %v575
    %v622 = vunpack.c.h.b16 %v575
    %v623 = vunpack.c.l.b16 %v576
    %v624 = vunpack.c.h.b16 %v576
    %v625 = vpack.c.b16 %v593, %v593
    %v626 = vpack.c.b16 %v594, %v594
    %v627 = vpack.c.b16 %v595, %v595
    %v628 = vpack.c.b16 %v596, %v596
    %v629 = vpack.c.b16 %v597, %v597
    %v630 = vpack.c.b16 %v598, %v598
    %v631 = vpack.c.b16 %v599, %v599
    %v632 = vpack.c.b16 %v600, %v600
    %v633 = vpack.c.b16 %v601, %v601
    %v634 = vpack.c.b16 %v602, %v602
    %v635 = vpack.c.b16 %v603, %v603
    %v636 = vpack.c.b16 %v604, %v604
    %v637 = vpack.c.b16 %v605, %v605
    %v638 = vpack.c.b16 %v606, %v606
    %v639 = vpack.c.b16 %v607, %v607
    %v640 = vpack.c.b16 %v608, %v608
    %v641 = vpack.c.b16 %v609, %v609
    %v642 = vpack.c.b16 %v610, %v610
    %v643 = vpack.c.b16 %v611, %v611
    %v644 = vpack.c.b16 %v612, %v612
    %v645 = vpack.c.b16 %v613, %v613
    %v646 = vpack.c.b16 %v614, %v614
    %v647 = vpack.c.b16 %v615, %v615
    %v648 = vpack.c.b16 %v616, %v616
    %v649 = vpack.c.b16 %v617, %v617
    %v650 = vpack.c.b16 %v618, %v618
    %v651 = vpack.c.b16 %v619, %v619
    %v652 = vpack.c.b16 %v620, %v620
    %v653 = vpack.c.b16 %v621, %v621
    %v654 = vpack.c.b16 %v622, %v622
    %v655 = vpack.c.b16 %v623, %v623
    %v656 = vpack.c.b16 %v624, %v624
    %vm689 = vcmask 781312
    %690 = vst.msk [vmem:[%s3] sm:$0xf] %vm689, %v625
    %691 = vst.msk [vmem:[%s3 + $0x4] sm:$0xf] %vm689, %v626
    %692 = vst.msk [vmem:[%s3 + $0x8] sm:$0xf] %vm689, %v627
    %693 = vst.msk [vmem:[%s3 + $0xc] sm:$0xf] %vm689, %v628
    %694 = vst.msk [vmem:[%s3 + $0x10] sm:$0xf] %vm689, %v629
    %695 = vst.msk [vmem:[%s3 + $0x14] sm:$0xf] %vm689, %v630
    %696 = vst.msk [vmem:[%s3 + $0x18] sm:$0xf] %vm689, %v631
    %697 = vst.msk [vmem:[%s3 + $0x1c] sm:$0xf] %vm689, %v632
    %698 = vst.msk [vmem:[%s3 + $0x20] sm:$0xf] %vm689, %v633
    %699 = vst.msk [vmem:[%s3 + $0x24] sm:$0xf] %vm689, %v634
    %700 = vst.msk [vmem:[%s3 + $0x28] sm:$0xf] %vm689, %v635
    %701 = vst.msk [vmem:[%s3 + $0x2c] sm:$0xf] %vm689, %v636
    %702 = vst.msk [vmem:[%s3 + $0x30] sm:$0xf] %vm689, %v637
    %703 = vst.msk [vmem:[%s3 + $0x34] sm:$0xf] %vm689, %v638
    %704 = vst.msk [vmem:[%s3 + $0x38] sm:$0xf] %vm689, %v639
    %705 = vst.msk [vmem:[%s3 + $0x3c] sm:$0xf] %vm689, %v640
    %706 = vst.msk [vmem:[%s3 + $0x40] sm:$0xf] %vm689, %v641
    %707 = vst.msk [vmem:[%s3 + $0x44] sm:$0xf] %vm689, %v642
    %708 = vst.msk [vmem:[%s3 + $0x48] sm:$0xf] %vm689, %v643
    %709 = vst.msk [vmem:[%s3 + $0x4c] sm:$0xf] %vm689, %v644
    %710 = vst.msk [vmem:[%s3 + $0x50] sm:$0xf] %vm689, %v645
    %711 = vst.msk [vmem:[%s3 + $0x54] sm:$0xf] %vm689, %v646
    %712 = vst.msk [vmem:[%s3 + $0x58] sm:$0xf] %vm689, %v647
    %713 = vst.msk [vmem:[%s3 + $0x5c] sm:$0xf] %vm689, %v648
    %714 = vst.msk [vmem:[%s3 + $0x60] sm:$0xf] %vm689, %v649
    %715 = vst.msk [vmem:[%s3 + $0x64] sm:$0xf] %vm689, %v650
    %716 = vst.msk [vmem:[%s3 + $0x68] sm:$0xf] %vm689, %v651
    %717 = vst.msk [vmem:[%s3 + $0x6c] sm:$0xf] %vm689, %v652
    %718 = vst.msk [vmem:[%s3 + $0x70] sm:$0xf] %vm689, %v653
    %719 = vst.msk [vmem:[%s3 + $0x74] sm:$0xf] %vm689, %v654
    %720 = vst.msk [vmem:[%s3 + $0x78] sm:$0xf] %vm689, %v655
    %721 = vst.msk [vmem:[%s3 + $0x7c] sm:$0xf] %vm689, %v656
  $region21: #{tpu_custom_call.1} parent=0 // pred_fallthru
    _
  // Predicated region
  $region22: #{tpu_custom_call.1} parent=0 // pred_check
    _
  $region23: #{tpu_custom_call.1} parent=0 // pred_check_branch
    %723 = sbr.rel (0) target = $region25
  $region24: #{tpu_custom_call.1} parent=0 // pred_region
    _
  $region25: #{tpu_custom_call.1} parent=0 // pred_fallthru
    _
  // Predicated region
  $region26: #{tpu_custom_call.1} parent=0 // pred_check
    _
  $region27: #{tpu_custom_call.1} parent=0 // pred_check_branch
    %725 = sbr.rel (0) target = $region29
  $region28: #{tpu_custom_call.1} parent=0 // pred_region
    _
  $region29: #{tpu_custom_call.1} parent=0 // pred_fallthru
    _

</llo_original>
